<compile_context>
chip_gen: v7x
topology: tpu7x:2x2x1
jax: 0.10.0
libtpu: 0.0.40
codegen_flags: <defaults>
</compile_context>

<pallas_src>
import jax
import jax.numpy as jnp
from jax.experimental import pallas as pl
from jax.experimental.pallas import tpu as pltpu

N_QUBITS = 4
N_LAYERS = 2
DIM = 2 ** N_QUBITS          # 16
PDIM = 2 * DIM               # 32 (packed real|imag)
SUBLANES = 8


# ----------------------------- gate construction (glue, plain JAX) ----------

def _ry(t):
    c = jnp.cos(t / 2).astype(jnp.complex64)
    s = jnp.sin(t / 2).astype(jnp.complex64)
    return jnp.stack([jnp.stack([c, -s]), jnp.stack([s, c])])


def _rz(t):
    t = t.astype(jnp.complex64)
    return jnp.diag(jnp.stack([jnp.exp(-0.5j * t), jnp.exp(0.5j * t)]))


_CNOT = jnp.array(
    [[1, 0, 0, 0], [0, 1, 0, 0], [0, 0, 0, 1], [0, 0, 1, 0]], dtype=jnp.complex64
)


def _embed_1q(g2, wire, n):
    # wire 0 = most-significant qubit (PennyLane default.qubit convention)
    m = jnp.eye(1, dtype=jnp.complex64)
    for w in range(n):
        m = jnp.kron(m, g2 if w == wire else jnp.eye(2, dtype=jnp.complex64))
    return m


def _embed_cnot(ctrl, n):
    m = jnp.eye(1, dtype=jnp.complex64)
    w = 0
    while w < n:
        if w == ctrl:
            m = jnp.kron(m, _CNOT)
            w += 2
        else:
            m = jnp.kron(m, jnp.eye(2, dtype=jnp.complex64))
            w += 1
    return m


def build_gate_list(angles, weights, n_qubits=N_QUBITS, n_layers=N_LAYERS):
    """All 26 gate unitaries (16x16 complex64) in application order."""
    gates = []
    for i in range(n_qubits):
        gates.append(_embed_1q(_ry(angles[i]), i, n_qubits))
    for layer in range(n_layers):
        for i in range(n_qubits):
            gates.append(_embed_1q(_rz(weights[layer, i, 0]), i, n_qubits))
            gates.append(_embed_1q(_ry(weights[layer, i, 1]), i, n_qubits))
        for i in range(n_qubits - 1):
            gates.append(_embed_cnot(i, n_qubits))
    return gates


def _fold(gates):
    """Product of gates in application order (later gates multiply on the left)."""
    u = jnp.eye(DIM, dtype=jnp.complex64)
    for g in gates:
        u = g @ u
    return u


def build_stage_matrices(angles, weights, n_qubits=N_QUBITS, n_layers=N_LAYERS):
    """Fold 26 gates into (1 + n_layers) stage unitaries, packed as real (32,32).

    Packed form of a stage unitary U (acting as row-vector psi @ U^T):
        M = [[ re(U^T),  im(U^T)],
             [-im(U^T),  re(U^T)]]
    so that [pr | pi] @ M = [re(U psi) | im(U psi)].
    Returns float32 array of shape (n_stages, 32, 32).
    """
    gates = build_gate_list(angles, weights, n_qubits, n_layers)
    per_layer = 2 * n_qubits + (n_qubits - 1)          # 11 gates per layer
    stages = [_fold(gates[:n_qubits])]
    off = n_qubits
    for _ in range(n_layers):
        stages.append(_fold(gates[off:off + per_layer]))
        off += per_layer

    packed = []
    for u in stages:
        ut = u.T
        re = jnp.real(ut).astype(jnp.float32)
        im = jnp.imag(ut).astype(jnp.float32)
        top = jnp.concatenate([re, im], axis=1)        # (16, 32)
        bot = jnp.concatenate([-im, re], axis=1)       # (16, 32)
        packed.append(jnp.concatenate([top, bot], axis=0))  # (32, 32)
    return jnp.stack(packed)                           # (n_stages, 32, 32)


def build_z_diag(n_qubits=N_QUBITS):
    """(n_qubits, 2**n_qubits) diagonals of PauliZ on each wire (wire 0 = MSB)."""
    dim = 2 ** n_qubits
    k = jnp.arange(dim)
    rows = []
    for i in range(n_qubits):
        bit = (k >> (n_qubits - 1 - i)) & 1
        rows.append(1.0 - 2.0 * bit.astype(jnp.float32))
    return jnp.stack(rows)


# ----------------------------- Pallas kernel ---------------------------------

def vqc_kernel(m_ref, out_ref):
    # m_ref  : (n_stages, 32, 32) packed real stage matrices (VMEM)
    # out_ref: (8, 16)            |psi|^2 probabilities, sublane-replicated
    #
    # State lives entirely in vregs: packed row tile [psi_re | psi_im] (8, 32),
    # sublane-replicated (the forward only consumes a single sample, x[0]).
    col = jax.lax.broadcasted_iota(jnp.int32, (SUBLANES, PDIM), 1)
    psi = jnp.where(col == 0, 1.0, 0.0).astype(jnp.float32)   # |0000>, no scratch read

    n_stages = m_ref.shape[0]            # static (3) -> fully unrolled
    for s in range(n_stages):
        psi = jnp.dot(psi, m_ref[s], preferred_element_type=jnp.float32)

    pr = psi[:, :DIM]
    pi = psi[:, DIM:]
    out_ref[...] = pr * pr + pi * pi     # probabilities; Z contraction done in wrapper


def vqc_pallas(m_packed, z_diag):
    probs = pl.pallas_call(
        vqc_kernel,
        out_shape=jax.ShapeDtypeStruct((SUBLANES, DIM), jnp.float32),
        in_specs=[pl.BlockSpec(memory_space=pltpu.MemorySpace.VMEM)],
        out_specs=pl.BlockSpec(memory_space=pltpu.MemorySpace.VMEM),
    )(m_packed)
    # tiny (4,16)@(16,) PauliZ contraction kept in the wrapper (VPU-scale work,
    # avoids a serialized tail matmul + narrow masked store inside the kernel)
    return z_diag @ probs[0]             # (n_qubits,) expectation values


# ----------------------------- driver ----------------------------------------

if __name__ == "__main__":
    key = jax.random.PRNGKey(0)
    kx, kw = jax.random.split(key)

    # x: (batch, n_qubits); only x[0] is consumed, matching the torch forward.
    x = jax.random.normal(kx, (2, N_QUBITS), dtype=jnp.float32)
    # torch.rand(n_layers, n_qubits, 2) -> deterministic uniform[0,1) weights.
    # NOTE: the torch module re-samples weights every forward; here they are
    # fixed deterministically as required for a synthetic kernel.
    weights = jax.random.uniform(kw, (N_LAYERS, N_QUBITS, 2), dtype=jnp.float32)

    m_packed = build_stage_matrices(x[0], weights)     # (3, 32, 32) float32
    z_diag = build_z_diag().astype(jnp.float32)        # (4, 16)

    out = jax.block_until_ready(vqc_pallas(m_packed, z_diag))

    # pure-JAX reference statevector simulation (unfolded 26-gate chain, complex64)
    gates = build_gate_list(x[0], weights)
    psi = jnp.zeros((DIM,), jnp.complex64).at[0].set(1.0)
    for g in gates:
        psi = g @ psi
    probs_ref = (jnp.abs(psi) ** 2).astype(jnp.float32)
    ref = z_diag @ probs_ref                           # (4,)

    assert out.shape == (N_QUBITS,)
    assert jnp.allclose(out, ref, atol=1e-5), (out, ref)
    print("KERNEL_OK")
</pallas_src>

<mosaic_0001>
module attributes {stable_mosaic.version = 11 : i64} {
  func.func @vqc_kernel(%arg0: memref<3x32x32xf32, #tpu.memory_space<vmem>>, %arg1: memref<8x16xf32, #tpu.memory_space<vmem>>) attributes {dimension_semantics = [], scalar_prefetch = 0 : i64, scratch_operands = 0 : i64, tpu.core_type = #tpu.core_type<tc>} {
    %0 = tpu.iota {dimensions = array<i32: 1>} : vector<8x32xi32>
    %c0_i32 = arith.constant 0 : i32
    %1 = vector.broadcast %c0_i32 : i32 to vector<8x32xi32>
    %2 = arith.cmpi eq, %0, %1 : vector<8x32xi32>
    %cst = arith.constant 1.000000e+00 : f32
    %cst_0 = arith.constant 0.000000e+00 : f32
    %3 = vector.broadcast %cst : f32 to vector<8x32xf32>
    %4 = vector.broadcast %cst_0 : f32 to vector<8x32xf32>
    %5 = arith.select %2, %3, %4 : vector<8x32xi1>, vector<8x32xf32>
    %c0 = arith.constant 0 : index
    %c0_1 = arith.constant 0 : index
    %c0_2 = arith.constant 0 : index
    %6 = vector.load %arg0[%c0, %c0_1, %c0_2] : memref<3x32x32xf32, #tpu.memory_space<vmem>>, vector<1x32x32xf32>
    %7 = vector.shape_cast %6 : vector<1x32x32xf32> to vector<32x32xf32>
    %cst_3 = arith.constant dense<0.000000e+00> : vector<8x32xf32>
    %8 = tpu.matmul %5, %7, %cst_3 {dimension_numbers = #tpu.dot_dimension_numbers<[1], [0], [0], [1], [0, 0, 1, 1], [], []>} : vector<8x32xf32>, vector<32x32xf32>, vector<8x32xf32> -> vector<8x32xf32>
    %c1 = arith.constant 1 : index
    %c0_4 = arith.constant 0 : index
    %c0_5 = arith.constant 0 : index
    %9 = vector.load %arg0[%c1, %c0_4, %c0_5] : memref<3x32x32xf32, #tpu.memory_space<vmem>>, vector<1x32x32xf32>
    %10 = vector.shape_cast %9 : vector<1x32x32xf32> to vector<32x32xf32>
    %cst_6 = arith.constant dense<0.000000e+00> : vector<8x32xf32>
    %11 = tpu.matmul %8, %10, %cst_6 {dimension_numbers = #tpu.dot_dimension_numbers<[1], [0], [0], [1], [0, 0, 1, 1], [], []>} : vector<8x32xf32>, vector<32x32xf32>, vector<8x32xf32> -> vector<8x32xf32>
    %c2 = arith.constant 2 : index
    %c0_7 = arith.constant 0 : index
    %c0_8 = arith.constant 0 : index
    %12 = vector.load %arg0[%c2, %c0_7, %c0_8] : memref<3x32x32xf32, #tpu.memory_space<vmem>>, vector<1x32x32xf32>
    %13 = vector.shape_cast %12 : vector<1x32x32xf32> to vector<32x32xf32>
    %cst_9 = arith.constant dense<0.000000e+00> : vector<8x32xf32>
    %14 = tpu.matmul %11, %13, %cst_9 {dimension_numbers = #tpu.dot_dimension_numbers<[1], [0], [0], [1], [0, 0, 1, 1], [], []>} : vector<8x32xf32>, vector<32x32xf32>, vector<8x32xf32> -> vector<8x32xf32>
    %15 = vector.extract_strided_slice %14 {offsets = [0, 0], sizes = [8, 16], strides = [1, 1]} : vector<8x32xf32> to vector<8x16xf32>
    %16 = vector.extract_strided_slice %14 {offsets = [0, 16], sizes = [8, 16], strides = [1, 1]} : vector<8x32xf32> to vector<8x16xf32>
    %17 = arith.mulf %15, %15 : vector<8x16xf32>
    %18 = arith.mulf %16, %16 : vector<8x16xf32>
    %19 = arith.addf %17, %18 : vector<8x16xf32>
    %c0_10 = arith.constant 0 : index
    %c0_11 = arith.constant 0 : index
    %20 = vector.load %arg1[%c0_10, %c0_11] : memref<8x16xf32, #tpu.memory_space<vmem>>, vector<8x16xf32>
    tpu.vector_store %arg1[%c0_10, %c0_11], %19 {strides = array<i32>} : memref<8x16xf32, #tpu.memory_space<vmem>>, vector<8x16xf32>,
    return
  }
}

</mosaic_0001>

<llo_original>
// kernel: tpu_custom_call.1
$region0: #{tpu_custom_call.1}
  #allocation0 [shape = 'u32[]', space=smem, size = 0x4, offset = 0x4, fixed_abs, tag = 'smem constant byte address 0x4 - core index']
  #allocation1 [shape = 'u32[144,128]{1,0:T(1,128)}', space=vmem, size = 0x12000, scoped, tag = 'internal scratch']
  %s0 = inlined_call_operand.hbm [shape: f32[3,32,32], index: 0, kind: input, shape index: {}]
  %s1 = inlined_call_operand.hbm [shape: f32[8,16], index: 1, kind: output, shape index: {}]
  %s2 = sld [smem:[#allocation0]]
  $region18: #{tpu_custom_call.1} parent=0
    _
  %s4 = ssub.s32 1, %s2
  %s5 = scalar_select 0, %s4, %s2
  $region1: #{tpu_custom_call.1} parent=0
    #allocation2 [shape = 'u8[49152]{0}', space=vmem, size = 0xc000, scoped, tag = 'input window, operand 0, single buffered']
    #allocation3 [shape = 's32[1]{0}', space=sflag, size = 0x4, scoped, tag = 'scoped memory for tpu_custom_call.1']
    #allocation4 [shape = 's32[1]{0}', space=sflag, size = 0x4, scoped, tag = 'scoped memory for tpu_custom_call.1']
    #allocation5 [shape = 'u8[4096]{0}', space=vmem, size = 0x1000, scoped, tag = 'output window, operand 0, single buffered']
    %6 = vsyncpa [#allocation3], 0
    %7 = vsyncpa [#allocation4], 0
    // Predicated region
    $region2: #{tpu_custom_call.1} parent=1 // pred_check
      _
    $region3: #{tpu_custom_call.1} parent=1 // pred_check_branch
      %9 = sbr.rel (0) target = $region5
    $region4: #{tpu_custom_call.1} parent=1 // pred_region
      %s11 = ssub.s32 1536, 1536
      %12 = vsyncadd [#allocation3], %s11
      %s13 = sshll.u32 [#allocation2], 4
      %s14 = int_to_ptr.vmem [resolvable:$true] %s13
      %19 = dma.hbm_to_vmem [thread:$0]  %s0, 1536, %s14, [#allocation3], 128, 128, 8
    $region5: #{tpu_custom_call.1} parent=1 // pred_fallthru
      _
    // Predicated region
    $region6: #{tpu_custom_call.1} parent=1 // pred_check
      _
    $region7: #{tpu_custom_call.1} parent=1 // pred_check_branch
      %21 = sbr.rel (0) target = $region9
    $region8: #{tpu_custom_call.1} parent=1 // pred_region
      %22 = dma.done [#allocation3], 1536
    $region9: #{tpu_custom_call.1} parent=1 // pred_fallthru
      _
    %v23 = vlaneseq
    %v24 = vand.u32 %v23, 127
    %vm25 = vcmp.eq.s32.totalorder %v24, 0
    %v26 = vsel %vm25, 1.0, 0.0
    %v27 = vld [vmem:[#allocation2] sm:$0xff]
    %v28 = vld [vmem:[#allocation2 + $0x8] sm:$0xff]
    %v29 = vld [vmem:[#allocation2 + $0x10] sm:$0xff]
    %v30 = vld [vmem:[#allocation2 + $0x18] sm:$0xff]
    %vm31 = vcmask 261120
    %v33 = vsel %vm31, %v26, 0
    %35 = vmatprep.subr.mxu0 0.0
    %36 = vmatpush1.msra.mxu0 %v27
    %37 = vmatprep.subr.mxu0 0.0
    %38 = vmatpush1.msra.mxu0 %v28
    %39 = vmatprep.subr.mxu0 0.0
    %40 = vmatpush1.msra.mxu0 %v29
    %41 = vmatprep.subr.mxu0 0.0
    %42 = vmatpush1.msra.mxu0 %v30
    %43 = vmatprep.subr.mxu0 0.0
    %44 = vmatpush1.msra.mxu0 0.0
    %45 = vmatprep.subr.mxu0 0.0
    %46 = vmatpush1.msra.mxu0 0.0
    %47 = vmatprep.subr.mxu0 0.0
    %48 = vmatpush1.msra.mxu0 0.0
    %49 = vmatprep.subr.mxu0 0.0
    %50 = vmatpush1.msra.mxu0 0.0
    %51 = vmatprep.subr.mxu0 0.0
    %52 = vmatpush1.msra.mxu0 0.0
    %53 = vmatprep.subr.mxu0 0.0
    %54 = vmatpush1.msra.mxu0 0.0
    %55 = vmatprep.subr.mxu0 0.0
    %56 = vmatpush1.msra.mxu0 0.0
    %57 = vmatprep.subr.mxu0 0.0
    %58 = vmatpush1.msra.mxu0 0.0
    %59 = vmatprep.subr.mxu0 0.0
    %60 = vmatpush1.msra.mxu0 0.0
    %61 = vmatprep.subr.mxu0 0.0
    %62 = vmatpush1.msra.mxu0 0.0
    %63 = vmatprep.subr.mxu0 0.0
    %64 = vmatpush1.msra.mxu0 0.0
    %65 = vmatprep.subr.mxu0 0.0
    %66 = vmatpush1.msra.mxu0 0.0
    %67 = vmatprep.subr.mxu0 0.0
    %68 = vmatpush1.msra.mxu0 0.0
    %69 = vmatprep.subr.mxu0 0.0
    %70 = vmatpush1.msra.mxu0 0.0
    %71 = vmatprep.subr.mxu0 0.0
    %72 = vmatpush1.msra.mxu0 0.0
    %73 = vmatprep.subr.mxu0 0.0
    %74 = vmatpush1.msra.mxu0 0.0
    %75 = vmatprep.subr.mxu0 0.0
    %76 = vmatpush1.msra.mxu0 0.0
    %77 = vmatprep.subr.mxu0 0.0
    %78 = vmatpush1.msra.mxu0 0.0
    %79 = vmatprep.subr.mxu0 0.0
    %80 = vmatpush1.msra.mxu0 0.0
    %81 = vmatprep.subr.mxu0 0.0
    %82 = vmatpush1.msra.mxu0 0.0
    %83 = vmatprep.subr.mxu0 0.0
    %84 = vmatpush1.msra.mxu0 0.0
    %85 = vmatprep.subr.mxu0 0.0
    %86 = vmatpush1.msra.mxu0 0.0
    %87 = vmatprep.subr.mxu0 0.0
    %88 = vmatpush1.msra.mxu0 0.0
    %89 = vmatprep.subr.mxu0 0.0
    %90 = vmatpush1.msra.mxu0 0.0
    %91 = vmatprep.subr.mxu0 0.0
    %92 = vmatpush1.msra.mxu0 0.0
    %93 = vmatprep.subr.mxu0 0.0
    %94 = vmatpush1.msra.mxu0 0.0
    %95 = vmatprep.subr.mxu0 0.0
    %96 = vmatpush1.msra.mxu0 0.0
    %97 = vmatprep.subr.mxu0 0.0
    %98 = vmatpush1.msra.mxu0 0.0
    %99 = vmatprep.mubr.f32.mxu0 0.0
    %100 = vmatmul.mubr.f32.gmra.mrb[0].mxu0 %v33
    %v101 = vpop.f32.mrb[0].mxu0
    %v102 = vadd.f32 0.0, %v101
    %v103 = vpop.f32.mrb[0].mxu0
    %104 = vdwg.mxu0
    %s105 = scalar_lea.vmem [#allocation2], 32
    %v106 = vld [vmem:[%s105] sm:$0xff]
    %v107 = vld [vmem:[%s105 + $0x8] sm:$0xff]
    %v108 = vld [vmem:[%s105 + $0x10] sm:$0xff]
    %v109 = vld [vmem:[%s105 + $0x18] sm:$0xff]
    %v111 = vsel %vm31, %v102, 0
    %113 = vmatprep.subr.mxu0 0.0
    %114 = vmatpush1.msra.mxu0 %v106
    %115 = vmatprep.subr.mxu0 0.0
    %116 = vmatpush1.msra.mxu0 %v107
    %117 = vmatprep.subr.mxu0 0.0
    %118 = vmatpush1.msra.mxu0 %v108
    %119 = vmatprep.subr.mxu0 0.0
    %120 = vmatpush1.msra.mxu0 %v109
    %121 = vmatprep.subr.mxu0 0.0
    %122 = vmatpush1.msra.mxu0 0.0
    %123 = vmatprep.subr.mxu0 0.0
    %124 = vmatpush1.msra.mxu0 0.0
    %125 = vmatprep.subr.mxu0 0.0
    %126 = vmatpush1.msra.mxu0 0.0
    %127 = vmatprep.subr.mxu0 0.0
    %128 = vmatpush1.msra.mxu0 0.0
    %129 = vmatprep.subr.mxu0 0.0
    %130 = vmatpush1.msra.mxu0 0.0
    %131 = vmatprep.subr.mxu0 0.0
    %132 = vmatpush1.msra.mxu0 0.0
    %133 = vmatprep.subr.mxu0 0.0
    %134 = vmatpush1.msra.mxu0 0.0
    %135 = vmatprep.subr.mxu0 0.0
    %136 = vmatpush1.msra.mxu0 0.0
    %137 = vmatprep.subr.mxu0 0.0
    %138 = vmatpush1.msra.mxu0 0.0
    %139 = vmatprep.subr.mxu0 0.0
    %140 = vmatpush1.msra.mxu0 0.0
    %141 = vmatprep.subr.mxu0 0.0
    %142 = vmatpush1.msra.mxu0 0.0
    %143 = vmatprep.subr.mxu0 0.0
    %144 = vmatpush1.msra.mxu0 0.0
    %145 = vmatprep.subr.mxu0 0.0
    %146 = vmatpush1.msra.mxu0 0.0
    %147 = vmatprep.subr.mxu0 0.0
    %148 = vmatpush1.msra.mxu0 0.0
    %149 = vmatprep.subr.mxu0 0.0
    %150 = vmatpush1.msra.mxu0 0.0
    %151 = vmatprep.subr.mxu0 0.0
    %152 = vmatpush1.msra.mxu0 0.0
    %153 = vmatprep.subr.mxu0 0.0
    %154 = vmatpush1.msra.mxu0 0.0
    %155 = vmatprep.subr.mxu0 0.0
    %156 = vmatpush1.msra.mxu0 0.0
    %157 = vmatprep.subr.mxu0 0.0
    %158 = vmatpush1.msra.mxu0 0.0
    %159 = vmatprep.subr.mxu0 0.0
    %160 = vmatpush1.msra.mxu0 0.0
    %161 = vmatprep.subr.mxu0 0.0
    %162 = vmatpush1.msra.mxu0 0.0
    %163 = vmatprep.subr.mxu0 0.0
    %164 = vmatpush1.msra.mxu0 0.0
    %165 = vmatprep.subr.mxu0 0.0
    %166 = vmatpush1.msra.mxu0 0.0
    %167 = vmatprep.subr.mxu0 0.0
    %168 = vmatpush1.msra.mxu0 0.0
    %169 = vmatprep.subr.mxu0 0.0
    %170 = vmatpush1.msra.mxu0 0.0
    %171 = vmatprep.subr.mxu0 0.0
    %172 = vmatpush1.msra.mxu0 0.0
    %173 = vmatprep.subr.mxu0 0.0
    %174 = vmatpush1.msra.mxu0 0.0
    %175 = vmatprep.subr.mxu0 0.0
    %176 = vmatpush1.msra.mxu0 0.0
    %177 = vmatprep.mubr.f32.mxu0 0.0
    %178 = vmatmul.mubr.f32.gmra.mrb[0].mxu0 %v111
    %v179 = vpop.f32.mrb[0].mxu0
    %v180 = vadd.f32 0.0, %v179
    %v181 = vpop.f32.mrb[0].mxu0
    %182 = vdwg.mxu0
    %s183 = scalar_lea.vmem [#allocation2], 64
    %v184 = vld [vmem:[%s183] sm:$0xff]
    %v185 = vld [vmem:[%s183 + $0x8] sm:$0xff]
    %v186 = vld [vmem:[%s183 + $0x10] sm:$0xff]
    %v187 = vld [vmem:[%s183 + $0x18] sm:$0xff]
    %v189 = vsel %vm31, %v180, 0
    %191 = vmatprep.subr.mxu0 0.0
    %192 = vmatpush1.msra.mxu0 %v184
    %193 = vmatprep.subr.mxu0 0.0
    %194 = vmatpush1.msra.mxu0 %v185
    %195 = vmatprep.subr.mxu0 0.0
    %196 = vmatpush1.msra.mxu0 %v186
    %197 = vmatprep.subr.mxu0 0.0
    %198 = vmatpush1.msra.mxu0 %v187
    %199 = vmatprep.subr.mxu0 0.0
    %200 = vmatpush1.msra.mxu0 0.0
    %201 = vmatprep.subr.mxu0 0.0
    %202 = vmatpush1.msra.mxu0 0.0
    %203 = vmatprep.subr.mxu0 0.0
    %204 = vmatpush1.msra.mxu0 0.0
    %205 = vmatprep.subr.mxu0 0.0
    %206 = vmatpush1.msra.mxu0 0.0
    %207 = vmatprep.subr.mxu0 0.0
    %208 = vmatpush1.msra.mxu0 0.0
    %209 = vmatprep.subr.mxu0 0.0
    %210 = vmatpush1.msra.mxu0 0.0
    %211 = vmatprep.subr.mxu0 0.0
    %212 = vmatpush1.msra.mxu0 0.0
    %213 = vmatprep.subr.mxu0 0.0
    %214 = vmatpush1.msra.mxu0 0.0
    %215 = vmatprep.subr.mxu0 0.0
    %216 = vmatpush1.msra.mxu0 0.0
    %217 = vmatprep.subr.mxu0 0.0
    %218 = vmatpush1.msra.mxu0 0.0
    %219 = vmatprep.subr.mxu0 0.0
    %220 = vmatpush1.msra.mxu0 0.0
    %221 = vmatprep.subr.mxu0 0.0
    %222 = vmatpush1.msra.mxu0 0.0
    %223 = vmatprep.subr.mxu0 0.0
    %224 = vmatpush1.msra.mxu0 0.0
    %225 = vmatprep.subr.mxu0 0.0
    %226 = vmatpush1.msra.mxu0 0.0
    %227 = vmatprep.subr.mxu0 0.0
    %228 = vmatpush1.msra.mxu0 0.0
    %229 = vmatprep.subr.mxu0 0.0
    %230 = vmatpush1.msra.mxu0 0.0
    %231 = vmatprep.subr.mxu0 0.0
    %232 = vmatpush1.msra.mxu0 0.0
    %233 = vmatprep.subr.mxu0 0.0
    %234 = vmatpush1.msra.mxu0 0.0
    %235 = vmatprep.subr.mxu0 0.0
    %236 = vmatpush1.msra.mxu0 0.0
    %237 = vmatprep.subr.mxu0 0.0
    %238 = vmatpush1.msra.mxu0 0.0
    %239 = vmatprep.subr.mxu0 0.0
    %240 = vmatpush1.msra.mxu0 0.0
    %241 = vmatprep.subr.mxu0 0.0
    %242 = vmatpush1.msra.mxu0 0.0
    %243 = vmatprep.subr.mxu0 0.0
    %244 = vmatpush1.msra.mxu0 0.0
    %245 = vmatprep.subr.mxu0 0.0
    %246 = vmatpush1.msra.mxu0 0.0
    %247 = vmatprep.subr.mxu0 0.0
    %248 = vmatpush1.msra.mxu0 0.0
    %249 = vmatprep.subr.mxu0 0.0
    %250 = vmatpush1.msra.mxu0 0.0
    %251 = vmatprep.subr.mxu0 0.0
    %252 = vmatpush1.msra.mxu0 0.0
    %253 = vmatprep.subr.mxu0 0.0
    %254 = vmatpush1.msra.mxu0 0.0
    %255 = vmatprep.mubr.f32.mxu0 0.0
    %256 = vmatmul.mubr.f32.gmra.mrb[0].mxu0 %v189
    %v257 = vpop.f32.mrb[0].mxu0
    %v258 = vadd.f32 0.0, %v257
    %v259 = vpop.f32.mrb[0].mxu0
    %260 = vdwg.mxu0
    %v261 = vmul.f32 %v258, %v258
    %263 = vrot.lane.b32.xlu0 %v261, 112
    %v264 = vpop.permute.xlu0 %263
    %v266 = vadd.f32 %v261, %v264
    %vm267 = vcmask 130048
    %268 = vst.msk [vmem:[#allocation5] sm:$0xff] %vm267, %v266
    // Predicated region
    $region10: #{tpu_custom_call.1} parent=1 // pred_check
      _
    $region11: #{tpu_custom_call.1} parent=1 // pred_check_branch
      %270 = sbr.rel (0) target = $region13
    $region12: #{tpu_custom_call.1} parent=1 // pred_region
      %s272 = ssub.s32 128, 128
      %273 = vsyncadd [#allocation4], %s272
      %s275 = sshll.u32 [#allocation5], 4
      %s276 = int_to_ptr.vmem [resolvable:$true] %s275
      %278 = dma.vmem_to_hbm [thread:$0]  %s276, 128, %s1, [#allocation4]
    $region13: #{tpu_custom_call.1} parent=1 // pred_fallthru
      _
    // Predicated region
    $region14: #{tpu_custom_call.1} parent=1 // pred_check
      _
    $region15: #{tpu_custom_call.1} parent=1 // pred_check_branch
      %280 = sbr.rel (0) target = $region17
    $region16: #{tpu_custom_call.1} parent=1 // pred_region
      %281 = dma.done [#allocation4], 128
    $region17: #{tpu_custom_call.1} parent=1 // pred_fallthru
      _
    %282 = vsyncpa [#allocation3], 1
    %283 = vsyncpa [#allocation4], 1

</llo_original>
